<compile_context>
chip_gen: v7x
topology: tpu7x:2x2x1
jax: 0.10.0
libtpu: 0.0.40
codegen_flags: <defaults>
</compile_context>

<pallas_src>
import math
from functools import partial

import jax
import jax.numpy as jnp
from jax.experimental import pallas as pl
from jax.experimental.pallas import tpu as pltpu


def _pick_tile(dim, candidates):
    """Largest candidate that evenly divides `dim`, else the full dim."""
    for c in candidates:
        if dim % c == 0:
            return c
    return dim


def _pick_tq(sq, num_heads, sk, aw_itemsize, budget_bytes=16 << 20):
    """Largest q-tile <= 128 whose double-buffered attention-weights block fits."""
    fallback = sq
    for c in (128, 64, 32, 16, 8):
        if sq % c == 0:
            fallback = c
            if 2 * num_heads * c * sk * aw_itemsize <= budget_bytes:
                return c
    return fallback


# ---------------------------------------------------------------------------
# Kernel 1: tiled linear  y = x @ W_t + b   (W_t pre-transposed: (D_in, D_out))
# Shared by the plain and fused-QKV paths (leading unit dims squeezed by specs).
# ---------------------------------------------------------------------------
def _linear_kernel(x_ref, w_ref, b_ref, o_ref, acc_ref, *, k_axis):
    kk = pl.program_id(k_axis)

    @pl.when(kk == 0)
    def _init():
        acc_ref[...] = jnp.zeros_like(acc_ref)

    x = x_ref[...]
    w = w_ref[...]                                  # clean 2-D (tk, tn) MXU RHS
    if x.dtype != w.dtype:
        x = x.astype(w.dtype)                       # bf16 MXU inputs, f32 accumulate
    acc_ref[...] += jnp.dot(x, w, preferred_element_type=jnp.float32)

    @pl.when(kk == pl.num_programs(k_axis) - 1)
    def _finalize():
        b = b_ref[...].astype(jnp.float32)          # (1, tn)
        o_ref[...] = (acc_ref[...] + b).astype(o_ref.dtype)


def _linear_tiles(M, N, K):
    tm = _pick_tile(M, (512, 256, 128, 64, 32, 16, 8))
    tn = _pick_tile(N, (256, 128))
    tk = _pick_tile(K, (1024, 512, 256, 128))
    return tm, tn, tk


def _linear_vmem_limit(tm, tn, tk, x_dt, w_dt, o_dt):
    blk = (tm * tk * jnp.dtype(x_dt).itemsize
           + tk * tn * jnp.dtype(w_dt).itemsize
           + tn * 4
           + tm * tn * jnp.dtype(o_dt).itemsize
           + tm * tn * 4)                           # f32 accumulator scratch
    return int(max(32 << 20, 4 * blk))


def linear(x2d, w_t, b, out_dtype=None):
    """x2d: (M, K), w_t: (K, N) pre-transposed, b: (N,) -> (M, N)."""
    M, K = x2d.shape
    N = w_t.shape[-1]
    out_dtype = out_dtype or x2d.dtype
    tm, tn, tk = _linear_tiles(M, N, K)
    grid = (M // tm, N // tn, K // tk)
    return pl.pallas_call(
        partial(_linear_kernel, k_axis=2),
        out_shape=jax.ShapeDtypeStruct((M, N), out_dtype),
        grid_spec=pltpu.PrefetchScalarGridSpec(
            num_scalar_prefetch=0,
            grid=grid,
            in_specs=[
                pl.BlockSpec((tm, tk), lambda i, j, kk: (i, kk)),
                pl.BlockSpec((tk, tn), lambda i, j, kk: (kk, j)),
                pl.BlockSpec((1, tn), lambda i, j, kk: (0, j)),
            ],
            out_specs=pl.BlockSpec((tm, tn), lambda i, j, kk: (i, j)),
            scratch_shapes=[pltpu.VMEM((tm, tn), jnp.float32)],
        ),
        compiler_params=pltpu.CompilerParams(
            dimension_semantics=("parallel", "parallel", "arbitrary"),
            vmem_limit_bytes=_linear_vmem_limit(tm, tn, tk, x2d.dtype, w_t.dtype,
                                                out_dtype)),
    )(x2d, w_t, b.reshape(1, N))


def linear_fused3(x2d, w3_t, b3, out_dtype=None):
    """Fused Q/K/V projection for self-attention.

    x2d: (M, K); w3_t: (3, K, N) stacked pre-transposed wq/wk/wv (scale folded
    into wq); b3: (3, 1, N).  Returns packed (3, M, N) so no HBM slice/split is
    needed downstream.
    """
    M, K = x2d.shape
    N = w3_t.shape[-1]
    out_dtype = out_dtype or w3_t.dtype
    tm, tn, tk = _linear_tiles(M, N, K)
    grid = (3, M // tm, N // tn, K // tk)
    return pl.pallas_call(
        partial(_linear_kernel, k_axis=3),
        out_shape=jax.ShapeDtypeStruct((3, M, N), out_dtype),
        grid_spec=pltpu.PrefetchScalarGridSpec(
            num_scalar_prefetch=0,
            grid=grid,
            in_specs=[
                pl.BlockSpec((tm, tk), lambda p, i, j, kk: (i, kk)),
                # Leading dims squeezed -> kernel sees clean (tk, tn) / (1, tn).
                pl.BlockSpec((None, tk, tn), lambda p, i, j, kk: (p, kk, j)),
                pl.BlockSpec((None, 1, tn), lambda p, i, j, kk: (p, 0, j)),
            ],
            out_specs=pl.BlockSpec((None, tm, tn), lambda p, i, j, kk: (p, i, j)),
            scratch_shapes=[pltpu.VMEM((tm, tn), jnp.float32)],
        ),
        compiler_params=pltpu.CompilerParams(
            dimension_semantics=("parallel", "parallel", "parallel", "arbitrary"),
            vmem_limit_bytes=_linear_vmem_limit(tm, tn, tk, x2d.dtype, w3_t.dtype,
                                                out_dtype)),
    )(x2d, w3_t, b3)


# ---------------------------------------------------------------------------
# Kernel 2: multi-head scaled-dot-product attention, one (batch, q-tile) per step.
# Heads split on-chip (no HBM head transposes); mask is additive and shared.
# ---------------------------------------------------------------------------
def _attention_kernel(q_ref, k_ref, v_ref, m_ref, o_ref, aw_ref, *,
                      num_heads, depth, mask_per_head):
    q = q_ref[...]                                   # (tq, D)  compute dtype
    k = k_ref[...]                                   # (Sk, D)
    v = v_ref[...]                                   # (Sk, D)

    shared_mask = None
    if (m_ref is not None) and (not mask_per_head):
        shared_mask = m_ref[...]                     # (tq, Sk) additive f32

    ctx_parts = []
    for h in range(num_heads):
        lo = h * depth
        qh = q[:, lo:lo + depth]                     # scale already folded into wq
        kh = k[:, lo:lo + depth]
        vh = v[:, lo:lo + depth]

        # q @ k^T without materializing a transpose (contract last dims of both).
        logits = jax.lax.dot_general(
            qh, kh, (((1,), (1,)), ((), ())),
            preferred_element_type=jnp.float32)      # (tq, Sk) f32

        if m_ref is not None:
            logits = logits + (m_ref[h] if mask_per_head else shared_mask)

        # f32 softmax over the last axis (matches torch softmax dim=-1).
        mx = jnp.max(logits, axis=-1, keepdims=True)
        e = jnp.exp(logits - mx)
        # approx reciprocal on the EUP slot (~1e-4 rel error, documented).
        attn = e * pl.reciprocal(jnp.sum(e, axis=-1, keepdims=True), approx=True)

        aw_ref[h] = attn.astype(aw_ref.dtype)        # lane-dense (tq, Sk) store
        ctx_parts.append(jnp.dot(attn.astype(vh.dtype), vh,
                                 preferred_element_type=jnp.float32))

    # ONE full-width lane-dense (tq, D) store instead of H masked partial stores.
    o_ref[...] = jnp.concatenate(ctx_parts, axis=-1).astype(o_ref.dtype)


def multi_head_sdpa(q, k, v, add_mask, num_heads, packed_qkv=None,
                    aw_dtype=jnp.float32):
    """Multi-head attention.

    Either pass separate q/k/v of shape (B, Sq, D)/(B, Sk, D)/(B, Sk, D), or a
    packed (3, B, S, D) array (self-attention) via `packed_qkv`.
    add_mask: None or ADDITIVE mask (B, 1 or H, Sq, Sk) f32 (already * -1e9).
    Returns ((B, Sq, D) context in the compute dtype, (B, H, Sq, Sk) weights).
    """
    if packed_qkv is not None:
        _, B, Sq, D = packed_qkv.shape
        Sk = Sq
        cdtype = packed_qkv.dtype
    else:
        B, Sq, D = q.shape
        Sk = k.shape[1]
        cdtype = q.dtype

    depth = D // num_heads
    aw_itemsize = jnp.dtype(aw_dtype).itemsize
    tq = _pick_tq(Sq, num_heads, Sk, aw_itemsize)    # capped at 128, VMEM-budgeted
    grid = (B, Sq // tq)

    if packed_qkv is not None:
        in_specs = [
            pl.BlockSpec((None, None, tq, D), lambda b, i: (0, b, i, 0)),   # q
            pl.BlockSpec((None, None, Sk, D), lambda b, i: (1, b, 0, 0)),   # k
            pl.BlockSpec((None, None, Sk, D), lambda b, i: (2, b, 0, 0)),   # v
        ]
        arrays = [packed_qkv, packed_qkv, packed_qkv]
    else:
        in_specs = [
            pl.BlockSpec((None, tq, D), lambda b, i: (b, i, 0)),
            pl.BlockSpec((None, Sk, D), lambda b, i: (b, 0, 0)),
            pl.BlockSpec((None, Sk, D), lambda b, i: (b, 0, 0)),
        ]
        arrays = [q, k, v]

    has_mask = add_mask is not None
    mask_per_head = False
    if has_mask:
        Hm = add_mask.shape[1]                       # 1 (shared) or num_heads
        mask_per_head = Hm != 1
        if mask_per_head:
            in_specs.append(pl.BlockSpec((None, Hm, tq, Sk),
                                         lambda b, i: (b, 0, i, 0)))
        else:
            in_specs.append(pl.BlockSpec((None, None, tq, Sk),
                                         lambda b, i: (b, 0, i, 0)))
        arrays.append(add_mask)

    body = partial(_attention_kernel, num_heads=num_heads, depth=depth,
                   mask_per_head=mask_per_head)
    if has_mask:
        def kernel(q_ref, k_ref, v_ref, m_ref, o_ref, aw_ref):
            body(q_ref, k_ref, v_ref, m_ref, o_ref, aw_ref)
    else:
        def kernel(q_ref, k_ref, v_ref, o_ref, aw_ref):
            body(q_ref, k_ref, v_ref, None, o_ref, aw_ref)

    out_specs = (
        pl.BlockSpec((None, tq, D), lambda b, i: (b, i, 0)),
        pl.BlockSpec((None, num_heads, tq, Sk), lambda b, i: (b, 0, i, 0)),
    )
    out_shape = (
        jax.ShapeDtypeStruct((B, Sq, D), cdtype),
        jax.ShapeDtypeStruct((B, num_heads, Sq, Sk), aw_dtype),
    )

    # Re-derived VMEM budget (all blocks double-buffered + f32 temporaries margin).
    cbytes = jnp.dtype(cdtype).itemsize
    blk = (tq * D * cbytes + 2 * Sk * D * cbytes
           + (tq * Sk * 4 if has_mask else 0)
           + tq * D * cbytes + num_heads * tq * Sk * aw_itemsize)
    vmem_limit = int(max(32 << 20, 4 * blk + (8 << 20)))

    return pl.pallas_call(
        kernel,
        out_shape=out_shape,
        grid=grid,
        in_specs=in_specs,
        out_specs=out_specs,
        compiler_params=pltpu.CompilerParams(
            dimension_semantics=("parallel", "parallel"),
            vmem_limit_bytes=vmem_limit),
    )(*arrays)


def _prepare_additive_mask(mask, B, H, Sq, Sk):
    """PyTorch-style broadcastable mask -> ADDITIVE (B, 1 or H, Sq, Sk) f32
    (mask * -1e9 done once at trace time; no per-head multiply in the kernel,
    no H-duplication in HBM unless the mask really differs per head)."""
    if mask is None:
        return None
    m = jnp.asarray(mask, jnp.float32)
    while m.ndim < 4:
        m = m[None]
    h_m = H if m.shape[1] == H else 1
    return jnp.broadcast_to(m, (B, h_m, Sq, Sk)) * (-1e9)


# ---------------------------------------------------------------------------
# MultiHeadAttention wrapper (glue in plain JAX, hot paths in Pallas)
# ---------------------------------------------------------------------------
class MultiHeadAttention:
    def __init__(self, d_model, num_heads, key, compute_dtype=jnp.bfloat16):
        assert d_model % num_heads == 0
        self.d_model = d_model
        self.num_heads = num_heads
        self.depth = d_model // num_heads
        self.compute_dtype = compute_dtype
        scale = 1.0 / math.sqrt(self.depth)

        ks = jax.random.split(key, 8)
        bound = 1.0 / math.sqrt(d_model)              # nn.Linear default init range

        def mk_w(kk):
            return jax.random.uniform(kk, (d_model, d_model), jnp.float32, -bound, bound)

        def mk_b(kk):
            return jax.random.uniform(kk, (d_model,), jnp.float32, -bound, bound)

        # f32 originals (nn.Linear-style (out, in)) kept for the pure-JAX reference.
        self.wq, self.bq = mk_w(ks[0]), mk_b(ks[1])
        self.wk, self.bk = mk_w(ks[2]), mk_b(ks[3])
        self.wv, self.bv = mk_w(ks[4]), mk_b(ks[5])
        self.wo, self.bo = mk_w(ks[6]), mk_b(ks[7])

        # Kernel weights: pre-transposed (D_in, D_out), bf16 (MXU-native), with the
        # 1/sqrt(depth) scale folded into wq/bq (completely free at runtime).
        self.wq_t = (self.wq.T * scale).astype(compute_dtype)
        self.wk_t = self.wk.T.astype(compute_dtype)
        self.wv_t = self.wv.T.astype(compute_dtype)
        self.wo_t = self.wo.T.astype(compute_dtype)
        self.bq_s = self.bq * scale                   # biases stay f32 (added in f32)

        # Fused QKV parameters for the self-attention fast path.
        self.w_qkv_t = jnp.stack([self.wq_t, self.wk_t, self.wv_t], axis=0)  # (3,D,D)
        self.b_qkv = jnp.stack([self.bq_s, self.bk, self.bv], axis=0).reshape(3, 1, d_model)

    def __call__(self, v, k, q, mask, self_attention=None):
        # Explicit flag preferred; object identity only as a fallback heuristic.
        if self_attention is None:
            self_attention = (q is k) and (k is v)

        B, Sq, D = q.shape
        Sk = k.shape[1]
        H = self.num_heads
        cdt = self.compute_dtype
        aw_dtype = q.dtype                            # attention weights in activation dtype
        add_mask = _prepare_additive_mask(mask, B, H, Sq, Sk)

        if self_attention:
            # One fused projection kernel -> packed (3, B, S, D), consumed directly
            # by the attention kernel (no HBM split / head transposes).
            qkv3 = linear_fused3(q.reshape(B * Sq, D), self.w_qkv_t, self.b_qkv,
                                 out_dtype=cdt).reshape(3, B, Sq, D)
            ctx, attn_w = multi_head_sdpa(None, None, None, add_mask, H,
                                          packed_qkv=qkv3, aw_dtype=aw_dtype)
        else:
            qp = linear(q.reshape(B * Sq, D), self.wq_t, self.bq_s, out_dtype=cdt
                        ).reshape(B, Sq, D)
            kp = linear(k.reshape(B * Sk, D), self.wk_t, self.bk, out_dtype=cdt
                        ).reshape(B, Sk, D)
            vp = linear(v.reshape(B * Sk, D), self.wv_t, self.bv, out_dtype=cdt
                        ).reshape(B, Sk, D)
            ctx, attn_w = multi_head_sdpa(qp, kp, vp, add_mask, H, aw_dtype=aw_dtype)

        # ctx is already (B, Sq, D) merged-head layout — no transpose needed.
        out = linear(ctx.reshape(B * Sq, D), self.wo_t, self.bo,
                     out_dtype=q.dtype).reshape(B, Sq, D)
        return out, attn_w


# ---------------------------------------------------------------------------
# Pure-JAX reference (mirrors the PyTorch module, f32) for a numerical check.
# ---------------------------------------------------------------------------
def _reference(mha, v, k, q, mask):
    B, Sq, D = q.shape
    Sk = k.shape[1]
    H, depth = mha.num_heads, mha.depth

    def lin(x, w, b):
        return x @ w.T + b

    qp = lin(q, mha.wq, mha.bq).reshape(B, Sq, H, depth).transpose(0, 2, 1, 3)
    kp = lin(k, mha.wk, mha.bk).reshape(B, Sk, H, depth).transpose(0, 2, 1, 3)
    vp = lin(v, mha.wv, mha.bv).reshape(B, Sk, H, depth).transpose(0, 2, 1, 3)
    logits = jnp.einsum('bhqd,bhkd->bhqk', qp, kp) / math.sqrt(depth)
    if mask is not None:
        m = jnp.asarray(mask, jnp.float32)
        while m.ndim < 4:
            m = m[None]
        logits = logits + m * (-1e9)
    aw = jax.nn.softmax(logits, axis=-1)
    ctx = jnp.einsum('bhqk,bhkd->bhqd', aw, vp).transpose(0, 2, 1, 3).reshape(B, Sq, D)
    out = lin(ctx, mha.wo, mha.bo)
    return out, aw


if __name__ == "__main__":
    key = jax.random.PRNGKey(0)
    k_param, k_x, k_q, k_k, k_v = jax.random.split(key, 5)

    B, S, D, H = 2, 8, 32, 4
    mha = MultiHeadAttention(d_model=D, num_heads=H, key=k_param)

    # 1) self-attention with a causal mask (fused-QKV + masked-kernel path)
    x = jax.random.normal(k_x, (B, S, D), jnp.float32)
    causal = 1.0 - jnp.tril(jnp.ones((S, S), jnp.float32))
    mask = jnp.broadcast_to(causal, (B, 1, S, S))
    out, attn_w = mha(x, x, x, mask, self_attention=True)

    # 2) cross-attention without a mask (separate projections + unmasked kernel)
    q2 = jax.random.normal(k_q, (B, S, D), jnp.float32)
    k2 = jax.random.normal(k_k, (B, S, D), jnp.float32)
    v2 = jax.random.normal(k_v, (B, S, D), jnp.float32)
    out2, attn_w2 = mha(v2, k2, q2, None)

    jax.block_until_ready((out, attn_w, out2, attn_w2))

    assert out.shape == (B, S, D) and attn_w.shape == (B, H, S, S)
    assert out2.shape == (B, S, D) and attn_w2.shape == (B, H, S, S)

    ref_out, ref_aw = _reference(mha, x, x, x, mask)
    ref_out2, ref_aw2 = _reference(mha, v2, k2, q2, None)
    assert float(jnp.max(jnp.abs(out - ref_out))) < 5e-2
    assert float(jnp.max(jnp.abs(attn_w - ref_aw))) < 5e-2
    assert float(jnp.max(jnp.abs(out2 - ref_out2))) < 5e-2
    assert float(jnp.max(jnp.abs(attn_w2 - ref_aw2))) < 5e-2

    print("KERNEL_OK")
</pallas_src>

<mosaic_0001>
module attributes {stable_mosaic.version = 11 : i64} {
  func.func @_linear_kernel(%arg0: i32, %arg1: i32, %arg2: i32, %arg3: i32, %arg4: memref<16x32xf32, #tpu.memory_space<vmem>>, %arg5: memref<1x32x32xbf16, #tpu.memory_space<vmem>>, %arg6: memref<1x1x32xf32, #tpu.memory_space<vmem>>, %arg7: memref<1x16x32xbf16, #tpu.memory_space<vmem>>, %arg8: memref<16x32xf32, #tpu.memory_space<vmem>>) attributes {dimension_semantics = [#tpu.dimension_semantics<parallel>, #tpu.dimension_semantics<parallel>, #tpu.dimension_semantics<parallel>, #tpu.dimension_semantics<arbitrary>], iteration_bounds = array<i64: 3, 1, 1, 1>, scalar_prefetch = 0 : i64, scratch_operands = 1 : i64, tpu.core_type = #tpu.core_type<tc>, window_params = [{transform_indices = @transform_0, window_bounds = array<i64: 16, 32>}, {transform_indices = @transform_1, window_bounds = array<i64: 1, 32, 32>}, {transform_indices = @transform_2, window_bounds = array<i64: 1, 1, 32>}, {transform_indices = @transform_3, window_bounds = array<i64: 1, 16, 32>}]} {
    %c0_i32 = arith.constant 0 : i32
    %0 = arith.cmpi eq, %arg3, %c0_i32 : i32
    %1 = arith.extui %0 : i1 to i32
    %c0_i32_0 = arith.constant 0 : i32
    %2 = arith.cmpi ne, %1, %c0_i32_0 : i32
    scf.if %2 {
      %cst_11 = arith.constant 0.000000e+00 : f32
      %14 = vector.broadcast %cst_11 : f32 to vector<16x32xf32>
      %c0_12 = arith.constant 0 : index
      %c0_13 = arith.constant 0 : index
      %15 = vector.load %arg8[%c0_12, %c0_13] : memref<16x32xf32, #tpu.memory_space<vmem>>, vector<16x32xf32>
      tpu.vector_store %arg8[%c0_12, %c0_13], %14 {strides = array<i32>} : memref<16x32xf32, #tpu.memory_space<vmem>>, vector<16x32xf32>,
    } else {
    }
    %c0 = arith.constant 0 : index
    %c0_1 = arith.constant 0 : index
    %3 = vector.load %arg4[%c0, %c0_1] : memref<16x32xf32, #tpu.memory_space<vmem>>, vector<16x32xf32>
    %c0_2 = arith.constant 0 : index
    %c0_3 = arith.constant 0 : index
    %c0_4 = arith.constant 0 : index
    %4 = vector.load %arg5[%c0_2, %c0_3, %c0_4] : memref<1x32x32xbf16, #tpu.memory_space<vmem>>, vector<1x32x32xbf16>
    %5 = vector.shape_cast %4 : vector<1x32x32xbf16> to vector<32x32xbf16>
    %6 = arith.truncf %3 : vector<16x32xf32> to vector<16x32xbf16>
    %c0_5 = arith.constant 0 : index
    %c0_6 = arith.constant 0 : index
    %7 = vector.load %arg8[%c0_5, %c0_6] : memref<16x32xf32, #tpu.memory_space<vmem>>, vector<16x32xf32>
    %cst = arith.constant dense<0.000000e+00> : vector<16x32xf32>
    %8 = tpu.matmul %6, %5, %cst {dimension_numbers = #tpu.dot_dimension_numbers<[1], [0], [0], [1], [0, 0, 1, 1], [], []>} : vector<16x32xbf16>, vector<32x32xbf16>, vector<16x32xf32> -> vector<16x32xf32>
    %9 = arith.addf %7, %8 : vector<16x32xf32>
    %c0_7 = arith.constant 0 : index
    %c0_8 = arith.constant 0 : index
    %10 = vector.load %arg8[%c0_7, %c0_8] : memref<16x32xf32, #tpu.memory_space<vmem>>, vector<16x32xf32>
    tpu.vector_store %arg8[%c0_7, %c0_8], %9 {strides = array<i32>} : memref<16x32xf32, #tpu.memory_space<vmem>>, vector<16x32xf32>,
    %c0_i32_9 = arith.constant 0 : i32
    %11 = arith.cmpi eq, %arg3, %c0_i32_9 : i32
    %12 = arith.extui %11 : i1 to i32
    %c0_i32_10 = arith.constant 0 : i32
    %13 = arith.cmpi ne, %12, %c0_i32_10 : i32
    scf.if %13 {
      %c0_11 = arith.constant 0 : index
      %c0_12 = arith.constant 0 : index
      %c0_13 = arith.constant 0 : index
      %14 = vector.load %arg6[%c0_11, %c0_12, %c0_13] : memref<1x1x32xf32, #tpu.memory_space<vmem>>, vector<1x1x32xf32>
      %15 = vector.shape_cast %14 : vector<1x1x32xf32> to vector<1x32xf32>
      %c0_14 = arith.constant 0 : index
      %c0_15 = arith.constant 0 : index
      %16 = vector.load %arg8[%c0_14, %c0_15] : memref<16x32xf32, #tpu.memory_space<vmem>>, vector<16x32xf32>
      %17 = vector.broadcast %15 : vector<1x32xf32> to vector<16x32xf32>
      %18 = arith.addf %16, %17 : vector<16x32xf32>
      %19 = arith.truncf %18 : vector<16x32xf32> to vector<16x32xbf16>
      %c0_16 = arith.constant 0 : index
      %c0_17 = arith.constant 0 : index
      %c0_18 = arith.constant 0 : index
      %20 = vector.load %arg7[%c0_16, %c0_17, %c0_18] : memref<1x16x32xbf16, #tpu.memory_space<vmem>>, vector<1x16x32xbf16>
      %21 = vector.shape_cast %20 : vector<1x16x32xbf16> to vector<16x32xbf16>
      %22 = vector.shape_cast %19 : vector<16x32xbf16> to vector<1x16x32xbf16>
      tpu.vector_store %arg7[%c0_16, %c0_17, %c0_18], %22 {strides = array<i32>} : memref<1x16x32xbf16, #tpu.memory_space<vmem>>, vector<1x16x32xbf16>,
    } else {
    }
    return
  }
  func.func @transform_0(%arg0: i32, %arg1: i32, %arg2: i32, %arg3: i32) -> (i32, i32) {
    %c0_i32 = arith.constant 0 : i32
    return %arg1, %arg3 : i32, i32
  }
  func.func @transform_1(%arg0: i32, %arg1: i32, %arg2: i32, %arg3: i32) -> (i32, i32, i32) {
    %c0_i32 = arith.constant 0 : i32
    return %arg0, %arg3, %arg2 : i32, i32, i32
  }
  func.func @transform_2(%arg0: i32, %arg1: i32, %arg2: i32, %arg3: i32) -> (i32, i32, i32) {
    %c0_i32 = arith.constant 0 : i32
    %c0_i32_0 = arith.constant 0 : i32
    return %arg0, %c0_i32, %arg2 : i32, i32, i32
  }
  func.func @transform_3(%arg0: i32, %arg1: i32, %arg2: i32, %arg3: i32) -> (i32, i32, i32) {
    %c0_i32 = arith.constant 0 : i32
    return %arg0, %arg1, %arg2 : i32, i32, i32
  }
}

</mosaic_0001>

<llo_original>
// kernel: tpu_custom_call.1
$region0: #{tpu_custom_call.1}
  #allocation0 [shape = 'u32[]', space=smem, size = 0x4, offset = 0x4, fixed_abs, tag = 'smem constant byte address 0x4 - core index']
  #allocation1 [shape = 'u32[144,128]{1,0:T(1,128)}', space=vmem, size = 0x12000, scoped, tag = 'internal scratch']
  #allocation2 [shape = 'f32[16,32]{1,0:T(8,128)}', space=vmem, size = 0x2000, scoped, tag = 'scratch operand']
  %s0 = inlined_call_operand.hbm [shape: f32[16,32], index: 0, kind: input, shape index: {}]
  %s1 = inlined_call_operand.hbm [shape: bf16[3,32,32], index: 1, kind: input, shape index: {}]
  %s2 = inlined_call_operand.vmem [shape: f32[3,1,32], index: 2, kind: input, shape index: {}]
  %s3 = inlined_call_operand.hbm [shape: bf16[3,16,32], index: 3, kind: output, shape index: {}]
  %s4 = sld [smem:[#allocation0]]
  $region61: #{tpu_custom_call.1} parent=0
    _
  %s6 = ssub.s32 1, %s4
  %s7 = scalar_select 0, %s6, %s4
  $region1: #{tpu_custom_call.1} parent=0
    #allocation3 [shape = 'u8[8192]{0}', space=vmem, size = 0x2000, scoped, tag = 'input window, operand 0, single buffered']
    #allocation4 [shape = 's32[2]{0}', space=sflag, size = 0x8, scoped, tag = 'scoped memory for tpu_custom_call.1']
    #allocation5 [shape = 's32[2]{0}', space=sflag, size = 0x8, scoped, tag = 'scoped memory for tpu_custom_call.1']
    #allocation6 [shape = 'u8[16384]{0}', space=vmem, size = 0x4000, scoped, tag = 'input window, operand 1']
    #allocation7 [shape = 's32[2]{0}', space=sflag, size = 0x8, scoped, tag = 'scoped memory for tpu_custom_call.1']
    #allocation8 [shape = 'u8[8192]{0}', space=vmem, size = 0x2000, scoped, tag = 'output window, operand 0']
    %8 = vsyncpa [#allocation4], 0
    %9 = vsyncpa [#allocation7], 0
    %s10 = scalar_lea.sflag [#allocation7], 1
    %11 = vsyncpa %s10, 0
    %12 = vsyncpa [#allocation5], 0
    %s13 = scalar_lea.sflag [#allocation5], 1
    %14 = vsyncpa %s13, 0
    loop: start=0, step=1, limit=5
    $region2: #{tpu_custom_call.1} parent=1 // loop_pre_header
      _
    $region3: #{tpu_custom_call.1} parent=1 // loop_header
      %s16 = sphi 0, %s20
      %p17 = scmp.ge.s32.totalorder %s16, 5
      %s23 = sphi 0, %s49
      %s24 = sphi 0, %s45
      %s25 = sphi 0, %s41
      %s26 = sphi 0, %s37
      %s27 = sphi 0, %s23
      %s28 = sphi 0, %s24
      %s29 = sphi 0, %s25
      %s30 = sphi 0, %s26
      %s31 = sphi 0, %s27
      %s32 = sphi 0, %s28
      %s33 = sphi 0, %s29
      %s34 = sphi 0, %s30
      %s54 = sphi 0, %s56
      %s57 = sphi 0, %s54
      %s58 = sphi 0, %s57
      %s74 = sphi 0, %s58
      %s84 = sphi 0, %s86
      %s87 = sphi 0, %s84
      %s88 = sphi 0, %s87
      %s104 = sphi 0, %s88
      %s112 = sphi 0, %s114
      %s115 = sphi 0, %s112
      %s116 = sphi 0, %s115
      %s132 = sphi 0, %s116
      %s142 = sphi 0, %s144
      %s145 = sphi 0, %s142
      %s146 = sphi 0, %s145
      %s162 = sphi 0, %s146
    $region4: #{tpu_custom_call.1} parent=1 // loop_header_branch
      %19 = sbr.rel (%p17) target = $region8
    $region5: #{tpu_custom_call.1} parent=1 // loop_body
      %s21 = ssub.s32 %s16, 1
      %s22 = ssub.s32 %s16, 2
      %s35 = sadd.s32 1, %s26
      %p36 = scmp.ge.s32.totalorder %s35, 1
      %s37 = scalar_select %p36, 0, %s35
      %s38 = sadd.s32 1, %s25
      %s39 = scalar_select %p36, %s38, %s25
      %p40 = scmp.ge.s32.totalorder %s39, 1
      %s41 = scalar_select %p40, 0, %s39
      %s42 = sadd.s32 1, %s24
      %s43 = scalar_select %p40, %s42, %s24
      %p44 = scmp.ge.s32.totalorder %s43, 1
      %s45 = scalar_select %p44, 0, %s43
      %s46 = sadd.s32 1, %s23
      %s47 = scalar_select %p44, %s46, %s23
      %p48 = scmp.ge.s32.totalorder %s47, 3
      %s49 = scalar_select %p48, 0, %s47
      %s50 = ssub.s32 %s24, %s45
      %s51 = ssub.s32 %s26, %s37
      %s52 = sor.u32 %s50, %s51
      %p53 = scmp.eq.s32.totalorder %s52, 0
      %s55 = sadd.s32 %s54, 1
      %s56 = scalar_select %p53, %s54, %s55
      %p59 = pneg %p53
      %p60 = scmp.eq.s32.totalorder %s16, 2
      %p61 = por %p59, %p60
      %p62 = scmp.ne.s32.totalorder %s54, %s57
      %p63 = scmp.eq.s32.totalorder %s16, 0
      %p64 = por %p62, %p63
      %p65 = scmp.ne.s32.totalorder %s54, %s57
      %p66 = scmp.eq.s32.totalorder %s21, 2
      %p67 = por %p65, %p66
      %p68 = scmp.ne.s32.totalorder %s57, %s58
      %p69 = scmp.eq.s32.totalorder %s21, 0
      %p70 = por %p68, %p69
      %p71 = scmp.ne.s32.totalorder %s57, %s58
      %p72 = scmp.eq.s32.totalorder %s22, 2
      %p73 = por %p71, %p72
      %p75 = scmp.ne.s32.totalorder %s58, %s74
      %p76 = scmp.eq.s32.totalorder %s22, 0
      %p77 = por %p75, %p76
      %s78 = ssub.s32 %s23, %s49
      %s79 = ssub.s32 %s26, %s37
      %s80 = sor.u32 %s78, %s79
      %s81 = ssub.s32 %s25, %s41
      %s82 = sor.u32 %s80, %s81
      %p83 = scmp.eq.s32.totalorder %s82, 0
      %s85 = sadd.s32 %s84, 1
      %s86 = scalar_select %p83, %s84, %s85
      %p89 = pneg %p83
      %p90 = scmp.eq.s32.totalorder %s16, 2
      %p91 = por %p89, %p90
      %p92 = scmp.ne.s32.totalorder %s84, %s87
      %p93 = scmp.eq.s32.totalorder %s16, 0
      %p94 = por %p92, %p93
      %p95 = scmp.ne.s32.totalorder %s84, %s87
      %p96 = scmp.eq.s32.totalorder %s21, 2
      %p97 = por %p95, %p96
      %p98 = scmp.ne.s32.totalorder %s87, %s88
      %p99 = scmp.eq.s32.totalorder %s21, 0
      %p100 = por %p98, %p99
      %p101 = scmp.ne.s32.totalorder %s87, %s88
      %p102 = scmp.eq.s32.totalorder %s22, 2
      %p103 = por %p101, %p102
      %p105 = scmp.ne.s32.totalorder %s88, %s104
      %p106 = scmp.eq.s32.totalorder %s22, 0
      %p107 = por %p105, %p106
      %s108 = ssub.s32 %s23, %s49
      %s109 = ssub.s32 %s25, %s41
      %s110 = sor.u32 %s108, %s109
      %p111 = scmp.eq.s32.totalorder %s110, 0
      %s113 = sadd.s32 %s112, 1
      %s114 = scalar_select %p111, %s112, %s113
      %p117 = pneg %p111
      %p118 = scmp.eq.s32.totalorder %s16, 2
      %p119 = por %p117, %p118
      %p120 = scmp.ne.s32.totalorder %s112, %s115
      %p121 = scmp.eq.s32.totalorder %s16, 0
      %p122 = por %p120, %p121
      %p123 = scmp.ne.s32.totalorder %s112, %s115
      %p124 = scmp.eq.s32.totalorder %s21, 2
      %p125 = por %p123, %p124
      %p126 = scmp.ne.s32.totalorder %s115, %s116
      %p127 = scmp.eq.s32.totalorder %s21, 0
      %p128 = por %p126, %p127
      %p129 = scmp.ne.s32.totalorder %s115, %s116
      %p130 = scmp.eq.s32.totalorder %s22, 2
      %p131 = por %p129, %p130
      %p133 = scmp.ne.s32.totalorder %s116, %s132
      %p134 = scmp.eq.s32.totalorder %s22, 0
      %p135 = por %p133, %p134
      %s136 = ssub.s32 %s23, %s49
      %s137 = ssub.s32 %s24, %s45
      %s138 = sor.u32 %s136, %s137
      %s139 = ssub.s32 %s25, %s41
      %s140 = sor.u32 %s138, %s139
      %p141 = scmp.eq.s32.totalorder %s140, 0
      %s143 = sadd.s32 %s142, 1
      %s144 = scalar_select %p141, %s142, %s143
      %p147 = pneg %p141
      %p148 = scmp.eq.s32.totalorder %s16, 2
      %p149 = por %p147, %p148
      %p150 = scmp.ne.s32.totalorder %s142, %s145
      %p151 = scmp.eq.s32.totalorder %s16, 0
      %p152 = por %p150, %p151
      %p153 = scmp.ne.s32.totalorder %s142, %s145
      %p154 = scmp.eq.s32.totalorder %s21, 2
      %p155 = por %p153, %p154
      %p156 = scmp.ne.s32.totalorder %s145, %s146
      %p157 = scmp.eq.s32.totalorder %s21, 0
      %p158 = por %p156, %p157
      %p159 = scmp.ne.s32.totalorder %s145, %s146
      %p160 = scmp.eq.s32.totalorder %s22, 2
      %p161 = por %p159, %p160
      %p163 = scmp.ne.s32.totalorder %s146, %s162
      %p164 = scmp.eq.s32.totalorder %s22, 0
      %p165 = por %p163, %p164
      %p166 = scmp.le.s32.totalorder 1, %s16
      %p167 = scmp.lt.s32.totalorder %s16, 4
      %p168 = pnand %p166, %p167
      %p169 = pneg %p168
      // Predicated region
      $region9: #{tpu_custom_call.1} parent=5 // pred_check
        _
      $region10: #{tpu_custom_call.1} parent=5 // pred_check_branch
        %171 = sbr.rel (%p168) target = $region12
      $region11: #{tpu_custom_call.1} parent=5 // pred_region
        %s172 = ssub.s32 %s16, 1
        // Predicated region
        $region13: #{tpu_custom_call.1} parent=11 // pred_check
          %p173 = pneg %p70
        $region14: #{tpu_custom_call.1} parent=11 // pred_check_branch
          %175 = sbr.rel (%p173) target = $region16
        $region15: #{tpu_custom_call.1} parent=11 // pred_region
          %s176 = smul.u32 2, %s28
          %s178 = ssub.s32 256, 256
          %179 = vsyncadd [#allocation4], %s178
          %s180 = sadd.s32 %s30, %s176
          %s181 = smul.addr %s180, 128
          %s182 = scalar_lea.hbm %s0, %s181
          %s183 = sshll.u32 [#allocation3], 4
          %s184 = int_to_ptr.vmem [resolvable:$true] %s183
          %189 = dma.hbm_to_vmem [thread:$0]  %s182, 256, %s184, [#allocation4], 128, 128, 8
        $region16: #{tpu_custom_call.1} parent=11 // pred_fallthru
          _
      $region12: #{tpu_custom_call.1} parent=5 // pred_fallthru
        _
      %p190 = scmp.lt.s32.totalorder %s16, 3
      // Predicated region
      $region17: #{tpu_custom_call.1} parent=5 // pred_check
        %p191 = pneg %p190
      $region18: #{tpu_custom_call.1} parent=5 // pred_check_branch
        %193 = sbr.rel (%p191) target = $region20
      $region19: #{tpu_custom_call.1} parent=5 // pred_region
        // Predicated region
        $region21: #{tpu_custom_call.1} parent=19 // pred_check
          %p194 = pneg %p94
        $region22: #{tpu_custom_call.1} parent=19 // pred_check_branch
          %196 = sbr.rel (%p194) target = $region24
        $region23: #{tpu_custom_call.1} parent=19 // pred_region
          %s197 = sand.u32 %s84, 1
          %s198 = scalar_lea.sflag [#allocation7], %s197
          %s199 = sand.u32 %s84, 1
          %s200 = smul.addr %s199, 16
          %s201 = scalar_lea.vmem [#allocation6], %s200
          %s202 = smul.u32 4, %s26
          %s204 = ssub.s32 256, 256
          %205 = vsyncadd %s198, %s204
          %s206 = sadd.s32 %s25, %s202
          %s207 = smul.addr %s23, 4
          %s208 = sadd.s32 %s206, %s207
          %s209 = smul.addr %s208, 64
          %s210 = scalar_lea.hbm %s1, %s209
          %s211 = sshll.u32 %s201, 4
          %s212 = int_to_ptr.vmem [resolvable:$true] %s211
          %217 = dma.hbm_to_vmem [thread:$0]  %s210, 256, %s212, %s198, 64, 64, 4
        $region24: #{tpu_custom_call.1} parent=19 // pred_fallthru
          _
        // Predicated region
        $region25: #{tpu_custom_call.1} parent=19 // pred_check
          %p218 = pneg %p122
        $region26: #{tpu_custom_call.1} parent=19 // pred_check_branch
          %220 = sbr.rel (%p218) target = $region28
        $region27: #{tpu_custom_call.1} parent=19 // pred_region
          %p221 = scmp.lt.s32.totalorder %s23, 2
          %s222 = scalar_select %p221, %s23, 2
          %p223 = scmp.lt.s32.totalorder %s25, 0
          %s224 = scalar_select %p223, %s25, 0
          %s225 = sadd.s32 %s224, %s222
          %s226 = scalar_lea.vmem %s2, %s225
        $region28: #{tpu_custom_call.1} parent=19 // pred_fallthru
          _
      $region20: #{tpu_custom_call.1} parent=5 // pred_fallthru
        _
      %p227 = scmp.le.s32.totalorder 1, %s16
      %p228 = scmp.lt.s32.totalorder %s16, 4
      %p229 = pnand %p227, %p228
      %p230 = pneg %p229
      // Predicated region
      $region29: #{tpu_custom_call.1} parent=5 // pred_check
        _
      $region30: #{tpu_custom_call.1} parent=5 // pred_check_branch
        %232 = sbr.rel (%p229) target = $region32
      $region31: #{tpu_custom_call.1} parent=5 // pred_region
        %s233 = ssub.s32 %s16, 1
        // Predicated region
        $region33: #{tpu_custom_call.1} parent=31 // pred_check
          %p234 = pneg %p70
        $region34: #{tpu_custom_call.1} parent=31 // pred_check_branch
          %236 = sbr.rel (%p234) target = $region36
        $region35: #{tpu_custom_call.1} parent=31 // pred_region
          %237 = dma.done [#allocation4], 256
        $region36: #{tpu_custom_call.1} parent=31 // pred_fallthru
          _
        %s238 = sand.u32 %s87, 1
        %s239 = scalar_lea.sflag [#allocation7], %s238
        %s240 = sand.u32 %s87, 1
        %s241 = smul.addr %s240, 16
        %s242 = scalar_lea.vmem [#allocation6], %s241
        // Predicated region
        $region37: #{tpu_custom_call.1} parent=31 // pred_check
          %p243 = pneg %p100
        $region38: #{tpu_custom_call.1} parent=31 // pred_check_branch
          %245 = sbr.rel (%p243) target = $region40
        $region39: #{tpu_custom_call.1} parent=31 // pred_region
          %246 = dma.done %s239, 256
        $region40: #{tpu_custom_call.1} parent=31 // pred_fallthru
          _
        %p247 = pneg %p70
        %p248 = pneg %p67
        %s249 = sand.u32 %s87, 1
        %s250 = scalar_lea.sflag [#allocation7], %s249
        %s251 = sand.u32 %s87, 1
        %s252 = smul.addr %s251, 16
        %s253 = scalar_lea.vmem [#allocation6], %s252
        %p254 = pneg %p100
        %p255 = pneg %p97
        %p256 = scmp.lt.s32.totalorder %s27, 2
        %s257 = scalar_select %p256, %s27, 2
        %p258 = scmp.lt.s32.totalorder %s29, 0
        %s259 = scalar_select %p258, %s29, 0
        %s260 = sadd.s32 %s259, %s257
        %s261 = scalar_lea.vmem %s2, %s260
        %p262 = pneg %p128
        %p263 = pneg %p125
        %p264 = pneg %p158
        %p265 = pneg %p155
        %s266 = sand.u32 %s145, 1
        %s267 = scalar_lea.sflag [#allocation5], %s266
        %s268 = sand.u32 %s145, 1
        %s269 = smul.addr %s268, 8
        %s270 = scalar_lea.vmem [#allocation8], %s269
        %s271 = smul.u32 2, %s28
        %s272 = smul.u32 4, %s30
        %p273 = scmp.lt.s32.totalorder %s27, 2
        %s274 = scalar_select %p273, %s27, 2
        %p275 = scmp.lt.s32.totalorder %s29, 0
        %s276 = scalar_select %p275, %s29, 0
        %s277 = sadd.s32 %s276, %s274
        %s278 = scalar_lea.vmem %s2, %s277
        %s279 = smul.u32 2, %s28
        %p281 = scmp.eq.s32.totalorder %s30, 0
        // Predicated region
        $region41: #{tpu_custom_call.1} parent=31 // pred_check
          %p282 = pneg %p281
        $region42: #{tpu_custom_call.1} parent=31 // pred_check_branch
          %284 = sbr.rel (%p282) target = $region44
        $region43: #{tpu_custom_call.1} parent=31 // pred_region
          %vm285 = vcmask 261120
          %286 = vst.msk [vmem:[#allocation2] sm:$0xff] %vm285, 0.0
          %287 = vst.msk [vmem:[#allocation2 + $0x8] sm:$0xff] %vm285, 0.0
        $region44: #{tpu_custom_call.1} parent=31 // pred_fallthru
          _
        %v288 = vld [vmem:[#allocation3] sm:$0xff]
        %v289 = vld [vmem:[#allocation3 + $0x8] sm:$0xff]
        %v290 = vld [vmem:[%s242] sm:$0xf]
        %v291 = vld [vmem:[%s242 + $0x4] sm:$0xf]
        %v292 = vld [vmem:[%s242 + $0x8] sm:$0xf]
        %v293 = vld [vmem:[%s242 + $0xc] sm:$0xf]
        %v294 = vpack.c.bf16 %v289, %v288
        %v295 = vld [vmem:[#allocation2] sm:$0xff]
        %v296 = vld [vmem:[#allocation2 + $0x8] sm:$0xff]
        %v301 = vunpack.c.l.b16 %v290
        %v302 = vunpack.c.l.b16 %v291
        %v303 = vunpack.c.l.b16 %v292
        %v304 = vunpack.c.l.b16 %v293
        %v305 = vpack.c.b16 %v302, %v301
        %v306 = vpack.c.b16 %v304, %v303
        %vm309 = vcmask 261120
        %v311 = vsel %vm309, %v294, 0
        %313 = vmatprep.subr.bf16.mxu0 0
        %314 = vmatpush1.bf16.msra.mxu0 %v305
        %315 = vmatprep.subr.bf16.mxu0 0
        %316 = vmatpush1.bf16.msra.mxu0 %v306
        %317 = vmatprep.subr.bf16.mxu0 0
        %318 = vmatpush1.bf16.msra.mxu0 0
        %319 = vmatprep.subr.bf16.mxu0 0
        %320 = vmatpush1.bf16.msra.mxu0 0
        %321 = vmatprep.subr.bf16.mxu0 0
        %322 = vmatpush1.bf16.msra.mxu0 0
        %323 = vmatprep.subr.bf16.mxu0 0
        %324 = vmatpush1.bf16.msra.mxu0 0
        %325 = vmatprep.subr.bf16.mxu0 0
        %326 = vmatpush1.bf16.msra.mxu0 0
        %327 = vmatprep.subr.bf16.mxu0 0
        %328 = vmatpush1.bf16.msra.mxu0 0
        %329 = vmatprep.subr.bf16.mxu0 0
        %330 = vmatpush1.bf16.msra.mxu0 0
        %331 = vmatprep.subr.bf16.mxu0 0
        %332 = vmatpush1.bf16.msra.mxu0 0
        %333 = vmatprep.subr.bf16.mxu0 0
        %334 = vmatpush1.bf16.msra.mxu0 0
        %335 = vmatprep.subr.bf16.mxu0 0
        %336 = vmatpush1.bf16.msra.mxu0 0
        %337 = vmatprep.subr.bf16.mxu0 0
        %338 = vmatpush1.bf16.msra.mxu0 0
        %339 = vmatprep.subr.bf16.mxu0 0
        %340 = vmatpush1.bf16.msra.mxu0 0
        %341 = vmatprep.subr.bf16.mxu0 0
        %342 = vmatpush1.bf16.msra.mxu0 0
        %343 = vmatprep.subr.bf16.mxu0 0
        %344 = vmatpush1.bf16.msra.mxu0 0
        %345 = vmatprep.mubr.bf16.mxu0 0
        %346 = vmatmul.mubr.bf16.gmra.mrb[0].mxu0 %v311
        %v347 = vpop.f32.mrb[0].mxu0
        %v348 = vadd.f32 0.0, %v347
        %v349 = vpop.f32.mrb[0].mxu0
        %v350 = vpop.f32.mrb[0].mxu0
        %v351 = vadd.f32 0.0, %v350
        %v352 = vpop.f32.mrb[0].mxu0
        %353 = vdwg.mxu0
        %v354 = vadd.f32 %v295, %v348
        %v355 = vadd.f32 %v296, %v351
        %356 = vst.msk [vmem:[#allocation2] sm:$0xff] %vm309, %v354
        %357 = vst.msk [vmem:[#allocation2 + $0x8] sm:$0xff] %vm309, %v355
        // Predicated region
        $region45: #{tpu_custom_call.1} parent=31 // pred_check
          %p358 = pneg %p281
        $region46: #{tpu_custom_call.1} parent=31 // pred_check_branch
          %360 = sbr.rel (%p358) target = $region48
        $region47: #{tpu_custom_call.1} parent=31 // pred_region
          %v361 = vld [vmem:[%s278] sm:$0x1]
          %v362 = vld [vmem:[#allocation2] sm:$0xff]
          %v363 = vld [vmem:[#allocation2 + $0x8] sm:$0xff]
          %v365 = vlaneseq
          %v366 = vshrl.u32 %v365, 7
          %v367 = vsub.s32 0, %v366
          %v368 = vrot.slane %v361, %v367
          %v370 = vadd.f32 %v362, %v368
          %v371 = vadd.f32 %v363, %v368
          %v372 = vpack.c.bf16 %v371, %v370
          %v374 = vunpack.c.l.b16 %v372
          %v375 = vunpack.c.h.b16 %v372
          %v376 = vpack.c.b16 %v374, %v374
          %v377 = vpack.c.b16 %v375, %v375
          %vm380 = vcmask 257024
          %381 = vst.msk [vmem:[%s270] sm:$0xf] %vm380, %v376
          %382 = vst.msk [vmem:[%s270 + $0x4] sm:$0xf] %vm380, %v377
        $region48: #{tpu_custom_call.1} parent=31 // pred_fallthru
          _
        %s383 = sand.u32 %s145, 1
        %s384 = scalar_lea.sflag [#allocation5], %s383
        %s385 = sand.u32 %s145, 1
        %s386 = smul.addr %s385, 8
        %s387 = scalar_lea.vmem [#allocation8], %s386
        // Predicated region
        $region49: #{tpu_custom_call.1} parent=31 // pred_check
          %p388 = pneg %p155
        $region50: #{tpu_custom_call.1} parent=31 // pred_check_branch
          %390 = sbr.rel (%p388) target = $region52
        $region51: #{tpu_custom_call.1} parent=31 // pred_region
          %s391 = smul.u32 2, %s28
          %s393 = ssub.s32 128, 128
          %394 = vsyncadd %s384, %s393
          %s395 = sadd.s32 %s29, %s391
          %s396 = smul.addr %s27, 2
          %s397 = sadd.s32 %s395, %s396
          %s398 = smul.addr %s397, 64
          %s399 = scalar_lea.hbm %s3, %s398
          %s400 = sshll.u32 %s387, 4
          %s401 = int_to_ptr.vmem [resolvable:$true] %s400
          %406 = dma.vmem_to_hbm [thread:$0]  %s401, 128, %s399, %s384, 64, 64, 4
        $region52: #{tpu_custom_call.1} parent=31 // pred_fallthru
          _
      $region32: #{tpu_custom_call.1} parent=5 // pred_fallthru
        _
      %p407 = scmp.le.s32.totalorder 2, %s16
      // Predicated region
      $region53: #{tpu_custom_call.1} parent=5 // pred_check
        %p408 = pneg %p407
      $region54: #{tpu_custom_call.1} parent=5 // pred_check_branch
        %410 = sbr.rel (%p408) target = $region56
      $region55: #{tpu_custom_call.1} parent=5 // pred_region
        %s411 = ssub.s32 %s16, 2
        // Predicated region
        $region57: #{tpu_custom_call.1} parent=55 // pred_check
          %p412 = pneg %p161
        $region58: #{tpu_custom_call.1} parent=55 // pred_check_branch
          %414 = sbr.rel (%p412) target = $region60
        $region59: #{tpu_custom_call.1} parent=55 // pred_region
          %s415 = sand.u32 %s146, 1
          %s416 = scalar_lea.sflag [#allocation5], %s415
          %s417 = sand.u32 %s146, 1
          %s418 = smul.addr %s417, 8
          %s419 = scalar_lea.vmem [#allocation8], %s418
          %420 = dma.done %s416, 128
        $region60: #{tpu_custom_call.1} parent=55 // pred_fallthru
          _
      $region56: #{tpu_custom_call.1} parent=5 // pred_fallthru
        _
    $region6: #{tpu_custom_call.1} parent=1 // loop_footer
      %s20 = sadd.s32 1, %s16
    $region7: #{tpu_custom_call.1} parent=1 // loop_footer_branch
      %15 = sbr.rel target = $region3
    $region8: #{tpu_custom_call.1} parent=1 // loop_exit
      _
    %421 = vsyncpa [#allocation4], 1
    %s422 = scalar_lea.sflag [#allocation4], 1
    %423 = vsyncpa %s422, 1
    %424 = vsyncpa [#allocation7], 1
    %s425 = scalar_lea.sflag [#allocation7], 1
    %426 = vsyncpa %s425, 1
    %427 = vsyncpa [#allocation5], 1
    %s428 = scalar_lea.sflag [#allocation5], 1
    %429 = vsyncpa %s428, 1

</llo_original>
